<compile_context>
chip_gen: v7x
topology: tpu7x:2x2x1
jax: 0.10.0
libtpu: 0.0.40
codegen_flags: <defaults>
</compile_context>

<pallas_src>
import jax
import jax.numpy as jnp
from jax.experimental import pallas as pl
from jax.experimental.pallas import tpu as pltpu

FEATURE_DIM = 1536   # H-Optimus-0 cls-token embedding dim
NUM_CLASSES = 2      # MHIST: HP vs SSA
LANE = 128           # TPU lane width (fast axis)
SUBLANE = 8          # f32 sublane tile
LN_EPS = 1e-6


def _round_up(x, m):
    return pl.cdiv(x, m) * m


# ----------------------------------------------------------------------------
# Pallas kernel: fused layer-norm epilogue + linear-probe head on the MXU.
# ----------------------------------------------------------------------------
def _probe_kernel(f_ref, w_ref, b_ref, o_ref):
    # f_ref: [TB, D]  raw (pre-norm) features, f32 (batch-tiled)
    # w_ref: [D, NP]  zero-padded, pre-transposed weight, bf16 (VMEM-resident)
    # b_ref: [1, NP]  zero-padded bias row, f32
    # o_ref: [TB, NP] logits, f32
    f = f_ref[...]
    # Layer-norm over the feature dim, done in f32 on the VPU/XLU (free under MXU).
    mu = jnp.mean(f, axis=-1, keepdims=True)
    var = jnp.mean(jnp.square(f - mu), axis=-1, keepdims=True)
    fn = (f - mu) * jax.lax.rsqrt(var + LN_EPS)
    # bf16 MXU matmul with f32 accumulation.
    acc = jnp.dot(fn.astype(jnp.bfloat16), w_ref[...],
                  preferred_element_type=jnp.float32)
    o_ref[...] = (acc + b_ref[...]).astype(o_ref.dtype)


def linear_probe_head(raw_feats, lin_w, lin_b, *, block_b=1024):
    """raw_feats: [B, D] f32 pre-norm features; lin_w: [N, D]; lin_b: [N].

    Returns [B, N] f32 logits (LayerNorm + nn.Linear fused in one kernel).
    """
    B, D = raw_feats.shape
    N, D2 = lin_w.shape
    assert D == D2

    # Pad the lane-sparse N=2 output to a full 128-lane tile (zero-padded
    # weight/bias columns -> padded logits are just the zero bias; sliced off).
    n_pad = _round_up(max(N, LANE), LANE)
    w_t = jnp.zeros((D, n_pad), jnp.bfloat16).at[:, :N].set(
        lin_w.T.astype(jnp.bfloat16))
    b_row = jnp.zeros((1, n_pad), jnp.float32).at[:, :N].set(
        lin_b.astype(jnp.float32))

    # Batch tile: at least one f32 sublane tile, at most block_b rows
    # (double-buffered f32 feature tile of 1024 rows ~= 12 MiB, v7x-safe).
    tb = min(block_b, _round_up(B, SUBLANE))
    tb = _round_up(tb, SUBLANE)
    b_pad = _round_up(B, tb)
    feats = raw_feats
    if b_pad != B:
        feats = jnp.pad(raw_feats, ((0, b_pad - B), (0, 0)))

    out = pl.pallas_call(
        _probe_kernel,
        out_shape=jax.ShapeDtypeStruct((b_pad, n_pad), jnp.float32),
        grid=(b_pad // tb,),
        in_specs=[
            pl.BlockSpec((tb, D), lambda i: (i, 0)),      # batch-tiled features
            pl.BlockSpec((D, n_pad), lambda i: (0, 0)),   # weight: VMEM-resident
            pl.BlockSpec((1, n_pad), lambda i: (0, 0)),   # bias row
        ],
        out_specs=pl.BlockSpec((tb, n_pad), lambda i: (i, 0)),
        compiler_params=pltpu.CompilerParams(
            dimension_semantics=("parallel",)),           # no reduction axis
    )(feats, w_t, b_row)
    return out[:B, :N]


# ----------------------------------------------------------------------------
# Frozen encoder stand-in (plain-JAX glue).
# ----------------------------------------------------------------------------
# TODO(synk): HOPTIMUSZero is a frozen ViT-G foundation model with no clean
# small Pallas equivalent; a deterministic frozen projection is used as a
# stand-in, and only its final layer-norm epilogue is fused into the kernel.
def synthetic_encoder_prenorm(x, enc_w):
    B = x.shape[0]
    return x.reshape(B, -1) @ enc_w               # [B, 1536] pre-norm features


def synthetic_encoder_ref(x, enc_w):
    feats = synthetic_encoder_prenorm(x, enc_w)
    mu = jnp.mean(feats, axis=-1, keepdims=True)
    var = jnp.var(feats, axis=-1, keepdims=True)
    return (feats - mu) / jnp.sqrt(var + LN_EPS)  # "x_norm_cls_token"


def linear_probe_forward(x, enc_w, lin_w, lin_b, *, block_b=1024):
    raw = synthetic_encoder_prenorm(x, enc_w)     # frozen encoder body
    raw = jax.lax.stop_gradient(raw)              # mirrors .detach() (encoder frozen)
    return linear_probe_head(raw, lin_w, lin_b, block_b=block_b)


if __name__ == "__main__":
    key = jax.random.PRNGKey(0)
    k_x, k_enc, k_w, k_b = jax.random.split(key, 4)

    # Small NCHW image batch consistent with the module's image input.
    B, C, H, W = 2, 3, 16, 16
    x = jax.random.normal(k_x, (B, C, H, W), dtype=jnp.float32)

    # Deterministic frozen encoder stand-in parameters.
    enc_w = jax.random.normal(k_enc, (C * H * W, FEATURE_DIM),
                              dtype=jnp.float32) / jnp.sqrt(C * H * W)

    # nn.Linear(1536, NUM_CLASSES) init (PyTorch default uniform(-k, k), k=1/sqrt(fan_in)).
    bound = 1.0 / jnp.sqrt(jnp.float32(FEATURE_DIM))
    lin_w = jax.random.uniform(k_w, (NUM_CLASSES, FEATURE_DIM),
                               minval=-bound, maxval=bound, dtype=jnp.float32)
    lin_b = jax.random.uniform(k_b, (NUM_CLASSES,),
                               minval=-bound, maxval=bound, dtype=jnp.float32)

    # --- Case 1: tiny batch (padded up to one (8,128) tile, grid = 1) -------
    out = jax.block_until_ready(linear_probe_forward(x, enc_w, lin_w, lin_b))
    ref = synthetic_encoder_ref(x, enc_w) @ lin_w.T + lin_b
    assert out.shape == (B, NUM_CLASSES)
    # bf16 MXU operands with f32 accumulation -> loosened tolerance.
    assert jnp.allclose(out, ref, atol=3e-2, rtol=3e-2), "mismatch vs reference"

    # --- Case 2: multi-tile path (batch padded, grid > 1, pipelined DMA) ----
    B2 = 20
    x2 = jax.random.normal(jax.random.PRNGKey(1), (B2, C, H, W), jnp.float32)
    out2 = jax.block_until_ready(
        linear_probe_forward(x2, enc_w, lin_w, lin_b, block_b=8))
    ref2 = synthetic_encoder_ref(x2, enc_w) @ lin_w.T + lin_b
    assert out2.shape == (B2, NUM_CLASSES)
    assert jnp.allclose(out2, ref2, atol=3e-2, rtol=3e-2), "mismatch vs reference (tiled)"

    print("KERNEL_OK")
</pallas_src>

<mosaic_0001>
module attributes {stable_mosaic.version = 11 : i64} {
  func.func @_probe_kernel(%arg0: i32, %arg1: memref<8x1536xf32, #tpu.memory_space<vmem>>, %arg2: memref<1536x128xbf16, #tpu.memory_space<vmem>>, %arg3: memref<1x128xf32, #tpu.memory_space<vmem>>, %arg4: memref<8x128xf32, #tpu.memory_space<vmem>>) attributes {dimension_semantics = [#tpu.dimension_semantics<parallel>], iteration_bounds = array<i64: 1>, scalar_prefetch = 0 : i64, scratch_operands = 0 : i64, tpu.core_type = #tpu.core_type<tc>, window_params = [{transform_indices = @transform_0, window_bounds = array<i64: 8, 1536>}, {pipeline_mode = #tpu.pipeline_mode<synchronous>, transform_indices = @transform_1, window_bounds = array<i64: 1536, 128>}, {pipeline_mode = #tpu.pipeline_mode<synchronous>, transform_indices = @transform_2, window_bounds = array<i64: 1, 128>}, {transform_indices = @transform_3, window_bounds = array<i64: 8, 128>}]} {
    %c0 = arith.constant 0 : index
    %c0_0 = arith.constant 0 : index
    %0 = vector.load %arg1[%c0, %c0_0] : memref<8x1536xf32, #tpu.memory_space<vmem>>, vector<8x1536xf32>
    %cst = arith.constant dense<0.000000e+00> : vector<8xf32>
    %1 = vector.multi_reduction <add>, %0, %cst [1] : vector<8x1536xf32> to vector<8xf32>
    %2 = vector.shape_cast %1 : vector<8xf32> to vector<8x1xf32>
    %cst_1 = arith.constant 1.536000e+03 : f32
    %3 = vector.broadcast %cst_1 : f32 to vector<8x1xf32>
    %4 = arith.divf %2, %3 : vector<8x1xf32>
    %5 = vector.broadcast %4 : vector<8x1xf32> to vector<8x1536xf32>
    %6 = arith.subf %0, %5 : vector<8x1536xf32>
    %7 = arith.mulf %6, %6 : vector<8x1536xf32>
    %cst_2 = arith.constant dense<0.000000e+00> : vector<8xf32>
    %8 = vector.multi_reduction <add>, %7, %cst_2 [1] : vector<8x1536xf32> to vector<8xf32>
    %9 = vector.shape_cast %8 : vector<8xf32> to vector<8x1xf32>
    %cst_3 = arith.constant 1.536000e+03 : f32
    %10 = vector.broadcast %cst_3 : f32 to vector<8x1xf32>
    %11 = arith.divf %9, %10 : vector<8x1xf32>
    %12 = vector.broadcast %4 : vector<8x1xf32> to vector<8x1536xf32>
    %13 = arith.subf %0, %12 : vector<8x1536xf32>
    %cst_4 = arith.constant 9.99999997E-7 : f32
    %14 = vector.broadcast %cst_4 : f32 to vector<8x1xf32>
    %15 = arith.addf %11, %14 : vector<8x1xf32>
    %16 = math.rsqrt %15 : vector<8x1xf32>
    %17 = vector.broadcast %16 : vector<8x1xf32> to vector<8x1536xf32>
    %18 = arith.mulf %13, %17 : vector<8x1536xf32>
    %19 = arith.truncf %18 : vector<8x1536xf32> to vector<8x1536xbf16>
    %c0_5 = arith.constant 0 : index
    %c0_6 = arith.constant 0 : index
    %20 = vector.load %arg2[%c0_5, %c0_6] : memref<1536x128xbf16, #tpu.memory_space<vmem>>, vector<1536x128xbf16>
    %cst_7 = arith.constant dense<0.000000e+00> : vector<8x128xf32>
    %21 = tpu.matmul %19, %20, %cst_7 {dimension_numbers = #tpu.dot_dimension_numbers<[1], [0], [0], [1], [0, 0, 1, 1], [], []>} : vector<8x1536xbf16>, vector<1536x128xbf16>, vector<8x128xf32> -> vector<8x128xf32>
    %c0_8 = arith.constant 0 : index
    %c0_9 = arith.constant 0 : index
    %22 = vector.load %arg3[%c0_8, %c0_9] : memref<1x128xf32, #tpu.memory_space<vmem>>, vector<1x128xf32>
    %23 = vector.broadcast %22 : vector<1x128xf32> to vector<8x128xf32>
    %24 = arith.addf %21, %23 : vector<8x128xf32>
    %c0_10 = arith.constant 0 : index
    %c0_11 = arith.constant 0 : index
    %25 = vector.load %arg4[%c0_10, %c0_11] : memref<8x128xf32, #tpu.memory_space<vmem>>, vector<8x128xf32>
    tpu.vector_store %arg4[%c0_10, %c0_11], %24 {strides = array<i32>} : memref<8x128xf32, #tpu.memory_space<vmem>>, vector<8x128xf32>,
    return
  }
  func.func @transform_0(%arg0: i32) -> (i32, i32) {
    %c0_i32 = arith.constant 0 : i32
    %c0_i32_0 = arith.constant 0 : i32
    return %arg0, %c0_i32 : i32, i32
  }
  func.func @transform_1(%arg0: i32) -> (i32, i32) {
    %c0_i32 = arith.constant 0 : i32
    %c0_i32_0 = arith.constant 0 : i32
    %c0_i32_1 = arith.constant 0 : i32
    return %c0_i32, %c0_i32_0 : i32, i32
  }
  func.func @transform_2(%arg0: i32) -> (i32, i32) {
    %c0_i32 = arith.constant 0 : i32
    %c0_i32_0 = arith.constant 0 : i32
    %c0_i32_1 = arith.constant 0 : i32
    return %c0_i32, %c0_i32_0 : i32, i32
  }
  func.func @transform_3(%arg0: i32) -> (i32, i32) {
    %c0_i32 = arith.constant 0 : i32
    %c0_i32_0 = arith.constant 0 : i32
    return %arg0, %c0_i32 : i32, i32
  }
}

</mosaic_0001>

<llo_original>
// kernel: tpu_custom_call.1
$region0: #{tpu_custom_call.1}
  #allocation0 [shape = 'u32[]', space=smem, size = 0x4, offset = 0x4, fixed_abs, tag = 'smem constant byte address 0x4 - core index']
  #allocation1 [shape = 'u32[144,128]{1,0:T(1,128)}', space=vmem, size = 0x12000, scoped, tag = 'internal scratch']
  %s0 = inlined_call_operand.hbm [shape: f32[8,1536], index: 0, kind: input, shape index: {}]
  %s1 = inlined_call_operand.hbm [shape: bf16[1536,128], index: 1, kind: input, shape index: {}]
  %s2 = inlined_call_operand.vmem [shape: f32[1,128], index: 2, kind: input, shape index: {}]
  %s3 = inlined_call_operand.hbm [shape: f32[8,128], index: 3, kind: output, shape index: {}]
  %s4 = sld [smem:[#allocation0]]
  $region30: #{tpu_custom_call.1} parent=0
    _
  %s6 = ssub.s32 1, %s4
  %s7 = scalar_select 0, %s6, %s4
  $region1: #{tpu_custom_call.1} parent=0
    #allocation2 [shape = 'u8[49152]{0}', space=vmem, size = 0xc000, scoped, tag = 'input window, operand 0, single buffered']
    #allocation3 [shape = 's32[1]{0}', space=sflag, size = 0x4, scoped, tag = 'scoped memory for tpu_custom_call.1']
    #allocation4 [shape = 's32[1]{0}', space=sflag, size = 0x4, scoped, tag = 'scoped memory for tpu_custom_call.1']
    #allocation5 [shape = 'u8[393216]{0}', space=vmem, size = 0x60000, scoped, tag = 'input window, operand 1, single buffered']
    #allocation6 [shape = 's32[1]{0}', space=sflag, size = 0x4, scoped, tag = 'scoped memory for tpu_custom_call.1']
    #allocation7 [shape = 'u8[4096]{0}', space=vmem, size = 0x1000, scoped, tag = 'output window, operand 0, single buffered']
    %8 = vsyncpa [#allocation3], 0
    %9 = vsyncpa [#allocation6], 0
    %10 = vsyncpa [#allocation4], 0
    // Predicated region
    $region2: #{tpu_custom_call.1} parent=1 // pred_check
      _
    $region3: #{tpu_custom_call.1} parent=1 // pred_check_branch
      %12 = sbr.rel (0) target = $region5
    $region4: #{tpu_custom_call.1} parent=1 // pred_region
      %s14 = ssub.s32 1536, 1536
      %15 = vsyncadd [#allocation3], %s14
      %s17 = sshll.u32 [#allocation2], 4
      %s18 = int_to_ptr.vmem [resolvable:$true] %s17
      %20 = dma.hbm_to_vmem [thread:$0]  %s0, 1536, %s18, [#allocation3]
    $region5: #{tpu_custom_call.1} parent=1 // pred_fallthru
      _
    // Predicated region
    $region6: #{tpu_custom_call.1} parent=1 // pred_check
      _
    $region7: #{tpu_custom_call.1} parent=1 // pred_check_branch
      %22 = sbr.rel (0) target = $region9
    $region8: #{tpu_custom_call.1} parent=1 // pred_region
      %s24 = ssub.s32 12288, 12288
      %25 = vsyncadd [#allocation6], %s24
      %s26 = sshll.u32 [#allocation5], 4
      %s27 = int_to_ptr.vmem [resolvable:$true] %s26
      %32 = dma.hbm_to_vmem [thread:$0]  %s1, 12288, %s27, [#allocation6], 64, 64, 4
    $region9: #{tpu_custom_call.1} parent=1 // pred_fallthru
      _
    // Predicated region
    $region10: #{tpu_custom_call.1} parent=1 // pred_check
      _
    $region11: #{tpu_custom_call.1} parent=1 // pred_check_branch
      %34 = sbr.rel (0) target = $region13
    $region12: #{tpu_custom_call.1} parent=1 // pred_region
      _
    $region13: #{tpu_custom_call.1} parent=1 // pred_fallthru
      _
    // Predicated region
    $region14: #{tpu_custom_call.1} parent=1 // pred_check
      _
    $region15: #{tpu_custom_call.1} parent=1 // pred_check_branch
      %36 = sbr.rel (0) target = $region17
    $region16: #{tpu_custom_call.1} parent=1 // pred_region
      %37 = dma.done [#allocation3], 1536
    $region17: #{tpu_custom_call.1} parent=1 // pred_fallthru
      _
    // Predicated region
    $region18: #{tpu_custom_call.1} parent=1 // pred_check
      _
    $region19: #{tpu_custom_call.1} parent=1 // pred_check_branch
      %39 = sbr.rel (0) target = $region21
    $region20: #{tpu_custom_call.1} parent=1 // pred_region
      %40 = dma.done [#allocation6], 12288
    $region21: #{tpu_custom_call.1} parent=1 // pred_fallthru
      _
    %v42 = vld [vmem:[#allocation2] sm:$0xff]
    %v43 = vld [vmem:[#allocation2 + $0x8] sm:$0xff]
    %v44 = vld [vmem:[#allocation2 + $0x10] sm:$0xff]
    %v45 = vld [vmem:[#allocation2 + $0x18] sm:$0xff]
    %v46 = vld [vmem:[#allocation2 + $0x20] sm:$0xff]
    %v47 = vld [vmem:[#allocation2 + $0x28] sm:$0xff]
    %v48 = vld [vmem:[#allocation2 + $0x30] sm:$0xff]
    %v49 = vld [vmem:[#allocation2 + $0x38] sm:$0xff]
    %v50 = vld [vmem:[#allocation2 + $0x40] sm:$0xff]
    %v51 = vld [vmem:[#allocation2 + $0x48] sm:$0xff]
    %v52 = vld [vmem:[#allocation2 + $0x50] sm:$0xff]
    %v53 = vld [vmem:[#allocation2 + $0x58] sm:$0xff]
    %v54 = vadd.f32 %v42, %v43
    %v55 = vadd.f32 %v54, %v44
    %v56 = vadd.f32 %v55, %v45
    %v57 = vadd.f32 %v56, %v46
    %v58 = vadd.f32 %v57, %v47
    %v59 = vadd.f32 %v58, %v48
    %v60 = vadd.f32 %v59, %v49
    %v61 = vadd.f32 %v60, %v50
    %v62 = vadd.f32 %v61, %v51
    %v63 = vadd.f32 %v62, %v52
    %v64 = vadd.f32 %v63, %v53
    %65 = vadd.xlane.f32.xlu0 %v64
    %v66 = vpop.xlane.xlu0 %65
    %v67 = vrcp.pop 1536.0
    %v68 = vmul.f32 %v66, %v67
    %v69 = vsub.f32 %v42, %v68
    %v70 = vsub.f32 %v43, %v68
    %v71 = vsub.f32 %v44, %v68
    %v72 = vsub.f32 %v45, %v68
    %v73 = vsub.f32 %v46, %v68
    %v74 = vsub.f32 %v47, %v68
    %v75 = vsub.f32 %v48, %v68
    %v76 = vsub.f32 %v49, %v68
    %v77 = vsub.f32 %v50, %v68
    %v78 = vsub.f32 %v51, %v68
    %v79 = vsub.f32 %v52, %v68
    %v80 = vsub.f32 %v53, %v68
    %v81 = vmul.f32 %v69, %v69
    %v82 = vmul.f32 %v70, %v70
    %v83 = vmul.f32 %v71, %v71
    %v84 = vmul.f32 %v72, %v72
    %v85 = vmul.f32 %v73, %v73
    %v86 = vmul.f32 %v74, %v74
    %v87 = vmul.f32 %v75, %v75
    %v88 = vmul.f32 %v76, %v76
    %v89 = vmul.f32 %v77, %v77
    %v90 = vmul.f32 %v78, %v78
    %v91 = vmul.f32 %v79, %v79
    %v92 = vmul.f32 %v80, %v80
    %v93 = vadd.f32 %v81, %v82
    %v94 = vadd.f32 %v93, %v83
    %v95 = vadd.f32 %v94, %v84
    %v96 = vadd.f32 %v95, %v85
    %v97 = vadd.f32 %v96, %v86
    %v98 = vadd.f32 %v97, %v87
    %v99 = vadd.f32 %v98, %v88
    %v100 = vadd.f32 %v99, %v89
    %v101 = vadd.f32 %v100, %v90
    %v102 = vadd.f32 %v101, %v91
    %v103 = vadd.f32 %v102, %v92
    %104 = vadd.xlane.f32.xlu0 %v103
    %v105 = vpop.xlane.xlu0 %104
    %v106 = vmul.f32 %v105, %v67
    %v107 = vadd.f32 %v106, 1e-06
    %v108 = vrsqrt.pop %v107
    %v109 = vmul.f32 %v69, %v108
    %v110 = vmul.f32 %v70, %v108
    %v111 = vmul.f32 %v71, %v108
    %v112 = vmul.f32 %v72, %v108
    %v113 = vmul.f32 %v73, %v108
    %v114 = vmul.f32 %v74, %v108
    %v115 = vmul.f32 %v75, %v108
    %v116 = vmul.f32 %v76, %v108
    %v117 = vmul.f32 %v77, %v108
    %v118 = vmul.f32 %v78, %v108
    %v119 = vmul.f32 %v79, %v108
    %v120 = vmul.f32 %v80, %v108
    %v121 = vpack.c.bf16 %v109, %v109
    %v122 = vpack.c.bf16 %v110, %v110
    %v123 = vpack.c.bf16 %v111, %v111
    %v124 = vpack.c.bf16 %v112, %v112
    %v125 = vpack.c.bf16 %v113, %v113
    %v126 = vpack.c.bf16 %v114, %v114
    %v127 = vpack.c.bf16 %v115, %v115
    %v128 = vpack.c.bf16 %v116, %v116
    %v129 = vpack.c.bf16 %v117, %v117
    %v130 = vpack.c.bf16 %v118, %v118
    %v131 = vpack.c.bf16 %v119, %v119
    %v132 = vpack.c.bf16 %v120, %v120
    %v133 = vld [vmem:[#allocation5] sm:$0xf]
    %v134 = vld [vmem:[#allocation5 + $0x4] sm:$0xf]
    %v135 = vld [vmem:[#allocation5 + $0x8] sm:$0xf]
    %v136 = vld [vmem:[#allocation5 + $0xc] sm:$0xf]
    %v137 = vld [vmem:[#allocation5 + $0x10] sm:$0xf]
    %v138 = vld [vmem:[#allocation5 + $0x14] sm:$0xf]
    %v139 = vld [vmem:[#allocation5 + $0x18] sm:$0xf]
    %v140 = vld [vmem:[#allocation5 + $0x1c] sm:$0xf]
    %v141 = vld [vmem:[#allocation5 + $0x20] sm:$0xf]
    %v142 = vld [vmem:[#allocation5 + $0x24] sm:$0xf]
    %v143 = vld [vmem:[#allocation5 + $0x28] sm:$0xf]
    %v144 = vld [vmem:[#allocation5 + $0x2c] sm:$0xf]
    %v145 = vld [vmem:[#allocation5 + $0x30] sm:$0xf]
    %v146 = vld [vmem:[#allocation5 + $0x34] sm:$0xf]
    %v147 = vld [vmem:[#allocation5 + $0x38] sm:$0xf]
    %v148 = vld [vmem:[#allocation5 + $0x3c] sm:$0xf]
    %v149 = vld [vmem:[#allocation5 + $0x40] sm:$0xf]
    %v150 = vld [vmem:[#allocation5 + $0x44] sm:$0xf]
    %v151 = vld [vmem:[#allocation5 + $0x48] sm:$0xf]
    %v152 = vld [vmem:[#allocation5 + $0x4c] sm:$0xf]
    %v153 = vld [vmem:[#allocation5 + $0x50] sm:$0xf]
    %v154 = vld [vmem:[#allocation5 + $0x54] sm:$0xf]
    %v155 = vld [vmem:[#allocation5 + $0x58] sm:$0xf]
    %v156 = vld [vmem:[#allocation5 + $0x5c] sm:$0xf]
    %v157 = vld [vmem:[#allocation5 + $0x60] sm:$0xf]
    %v158 = vld [vmem:[#allocation5 + $0x64] sm:$0xf]
    %v159 = vld [vmem:[#allocation5 + $0x68] sm:$0xf]
    %v160 = vld [vmem:[#allocation5 + $0x6c] sm:$0xf]
    %v161 = vld [vmem:[#allocation5 + $0x70] sm:$0xf]
    %v162 = vld [vmem:[#allocation5 + $0x74] sm:$0xf]
    %v163 = vld [vmem:[#allocation5 + $0x78] sm:$0xf]
    %v164 = vld [vmem:[#allocation5 + $0x7c] sm:$0xf]
    %v165 = vld [vmem:[#allocation5 + $0x80] sm:$0xf]
    %v166 = vld [vmem:[#allocation5 + $0x84] sm:$0xf]
    %v167 = vld [vmem:[#allocation5 + $0x88] sm:$0xf]
    %v168 = vld [vmem:[#allocation5 + $0x8c] sm:$0xf]
    %v169 = vld [vmem:[#allocation5 + $0x90] sm:$0xf]
    %v170 = vld [vmem:[#allocation5 + $0x94] sm:$0xf]
    %v171 = vld [vmem:[#allocation5 + $0x98] sm:$0xf]
    %v172 = vld [vmem:[#allocation5 + $0x9c] sm:$0xf]
    %v173 = vld [vmem:[#allocation5 + $0xa0] sm:$0xf]
    %v174 = vld [vmem:[#allocation5 + $0xa4] sm:$0xf]
    %v175 = vld [vmem:[#allocation5 + $0xa8] sm:$0xf]
    %v176 = vld [vmem:[#allocation5 + $0xac] sm:$0xf]
    %v177 = vld [vmem:[#allocation5 + $0xb0] sm:$0xf]
    %v178 = vld [vmem:[#allocation5 + $0xb4] sm:$0xf]
    %v179 = vld [vmem:[#allocation5 + $0xb8] sm:$0xf]
    %v180 = vld [vmem:[#allocation5 + $0xbc] sm:$0xf]
    %v181 = vld [vmem:[#allocation5 + $0xc0] sm:$0xf]
    %v182 = vld [vmem:[#allocation5 + $0xc4] sm:$0xf]
    %v183 = vld [vmem:[#allocation5 + $0xc8] sm:$0xf]
    %v184 = vld [vmem:[#allocation5 + $0xcc] sm:$0xf]
    %v185 = vld [vmem:[#allocation5 + $0xd0] sm:$0xf]
    %v186 = vld [vmem:[#allocation5 + $0xd4] sm:$0xf]
    %v187 = vld [vmem:[#allocation5 + $0xd8] sm:$0xf]
    %v188 = vld [vmem:[#allocation5 + $0xdc] sm:$0xf]
    %v189 = vld [vmem:[#allocation5 + $0xe0] sm:$0xf]
    %v190 = vld [vmem:[#allocation5 + $0xe4] sm:$0xf]
    %v191 = vld [vmem:[#allocation5 + $0xe8] sm:$0xf]
    %v192 = vld [vmem:[#allocation5 + $0xec] sm:$0xf]
    %v193 = vld [vmem:[#allocation5 + $0xf0] sm:$0xf]
    %v194 = vld [vmem:[#allocation5 + $0xf4] sm:$0xf]
    %v195 = vld [vmem:[#allocation5 + $0xf8] sm:$0xf]
    %v196 = vld [vmem:[#allocation5 + $0xfc] sm:$0xf]
    %v197 = vld [vmem:[#allocation5 + $0x100] sm:$0xf]
    %v198 = vld [vmem:[#allocation5 + $0x104] sm:$0xf]
    %v199 = vld [vmem:[#allocation5 + $0x108] sm:$0xf]
    %v200 = vld [vmem:[#allocation5 + $0x10c] sm:$0xf]
    %v201 = vld [vmem:[#allocation5 + $0x110] sm:$0xf]
    %v202 = vld [vmem:[#allocation5 + $0x114] sm:$0xf]
    %v203 = vld [vmem:[#allocation5 + $0x118] sm:$0xf]
    %v204 = vld [vmem:[#allocation5 + $0x11c] sm:$0xf]
    %v205 = vld [vmem:[#allocation5 + $0x120] sm:$0xf]
    %v206 = vld [vmem:[#allocation5 + $0x124] sm:$0xf]
    %v207 = vld [vmem:[#allocation5 + $0x128] sm:$0xf]
    %v208 = vld [vmem:[#allocation5 + $0x12c] sm:$0xf]
    %v209 = vld [vmem:[#allocation5 + $0x130] sm:$0xf]
    %v210 = vld [vmem:[#allocation5 + $0x134] sm:$0xf]
    %v211 = vld [vmem:[#allocation5 + $0x138] sm:$0xf]
    %v212 = vld [vmem:[#allocation5 + $0x13c] sm:$0xf]
    %v213 = vld [vmem:[#allocation5 + $0x140] sm:$0xf]
    %v214 = vld [vmem:[#allocation5 + $0x144] sm:$0xf]
    %v215 = vld [vmem:[#allocation5 + $0x148] sm:$0xf]
    %v216 = vld [vmem:[#allocation5 + $0x14c] sm:$0xf]
    %v217 = vld [vmem:[#allocation5 + $0x150] sm:$0xf]
    %v218 = vld [vmem:[#allocation5 + $0x154] sm:$0xf]
    %v219 = vld [vmem:[#allocation5 + $0x158] sm:$0xf]
    %v220 = vld [vmem:[#allocation5 + $0x15c] sm:$0xf]
    %v221 = vld [vmem:[#allocation5 + $0x160] sm:$0xf]
    %v222 = vld [vmem:[#allocation5 + $0x164] sm:$0xf]
    %v223 = vld [vmem:[#allocation5 + $0x168] sm:$0xf]
    %v224 = vld [vmem:[#allocation5 + $0x16c] sm:$0xf]
    %v225 = vld [vmem:[#allocation5 + $0x170] sm:$0xf]
    %v226 = vld [vmem:[#allocation5 + $0x174] sm:$0xf]
    %v227 = vld [vmem:[#allocation5 + $0x178] sm:$0xf]
    %v228 = vld [vmem:[#allocation5 + $0x17c] sm:$0xf]
    %v229 = vld [vmem:[#allocation5 + $0x180] sm:$0xf]
    %v230 = vld [vmem:[#allocation5 + $0x184] sm:$0xf]
    %v231 = vld [vmem:[#allocation5 + $0x188] sm:$0xf]
    %v232 = vld [vmem:[#allocation5 + $0x18c] sm:$0xf]
    %v233 = vld [vmem:[#allocation5 + $0x190] sm:$0xf]
    %v234 = vld [vmem:[#allocation5 + $0x194] sm:$0xf]
    %v235 = vld [vmem:[#allocation5 + $0x198] sm:$0xf]
    %v236 = vld [vmem:[#allocation5 + $0x19c] sm:$0xf]
    %v237 = vld [vmem:[#allocation5 + $0x1a0] sm:$0xf]
    %v238 = vld [vmem:[#allocation5 + $0x1a4] sm:$0xf]
    %v239 = vld [vmem:[#allocation5 + $0x1a8] sm:$0xf]
    %v240 = vld [vmem:[#allocation5 + $0x1ac] sm:$0xf]
    %v241 = vld [vmem:[#allocation5 + $0x1b0] sm:$0xf]
    %v242 = vld [vmem:[#allocation5 + $0x1b4] sm:$0xf]
    %v243 = vld [vmem:[#allocation5 + $0x1b8] sm:$0xf]
    %v244 = vld [vmem:[#allocation5 + $0x1bc] sm:$0xf]
    %v245 = vld [vmem:[#allocation5 + $0x1c0] sm:$0xf]
    %v246 = vld [vmem:[#allocation5 + $0x1c4] sm:$0xf]
    %v247 = vld [vmem:[#allocation5 + $0x1c8] sm:$0xf]
    %v248 = vld [vmem:[#allocation5 + $0x1cc] sm:$0xf]
    %v249 = vld [vmem:[#allocation5 + $0x1d0] sm:$0xf]
    %v250 = vld [vmem:[#allocation5 + $0x1d4] sm:$0xf]
    %v251 = vld [vmem:[#allocation5 + $0x1d8] sm:$0xf]
    %v252 = vld [vmem:[#allocation5 + $0x1dc] sm:$0xf]
    %v253 = vld [vmem:[#allocation5 + $0x1e0] sm:$0xf]
    %v254 = vld [vmem:[#allocation5 + $0x1e4] sm:$0xf]
    %v255 = vld [vmem:[#allocation5 + $0x1e8] sm:$0xf]
    %v256 = vld [vmem:[#allocation5 + $0x1ec] sm:$0xf]
    %v257 = vld [vmem:[#allocation5 + $0x1f0] sm:$0xf]
    %v258 = vld [vmem:[#allocation5 + $0x1f4] sm:$0xf]
    %v259 = vld [vmem:[#allocation5 + $0x1f8] sm:$0xf]
    %v260 = vld [vmem:[#allocation5 + $0x1fc] sm:$0xf]
    %v261 = vld [vmem:[#allocation5 + $0x200] sm:$0xf]
    %v262 = vld [vmem:[#allocation5 + $0x204] sm:$0xf]
    %v263 = vld [vmem:[#allocation5 + $0x208] sm:$0xf]
    %v264 = vld [vmem:[#allocation5 + $0x20c] sm:$0xf]
    %v265 = vld [vmem:[#allocation5 + $0x210] sm:$0xf]
    %v266 = vld [vmem:[#allocation5 + $0x214] sm:$0xf]
    %v267 = vld [vmem:[#allocation5 + $0x218] sm:$0xf]
    %v268 = vld [vmem:[#allocation5 + $0x21c] sm:$0xf]
    %v269 = vld [vmem:[#allocation5 + $0x220] sm:$0xf]
    %v270 = vld [vmem:[#allocation5 + $0x224] sm:$0xf]
    %v271 = vld [vmem:[#allocation5 + $0x228] sm:$0xf]
    %v272 = vld [vmem:[#allocation5 + $0x22c] sm:$0xf]
    %v273 = vld [vmem:[#allocation5 + $0x230] sm:$0xf]
    %v274 = vld [vmem:[#allocation5 + $0x234] sm:$0xf]
    %v275 = vld [vmem:[#allocation5 + $0x238] sm:$0xf]
    %v276 = vld [vmem:[#allocation5 + $0x23c] sm:$0xf]
    %v277 = vld [vmem:[#allocation5 + $0x240] sm:$0xf]
    %v278 = vld [vmem:[#allocation5 + $0x244] sm:$0xf]
    %v279 = vld [vmem:[#allocation5 + $0x248] sm:$0xf]
    %v280 = vld [vmem:[#allocation5 + $0x24c] sm:$0xf]
    %v281 = vld [vmem:[#allocation5 + $0x250] sm:$0xf]
    %v282 = vld [vmem:[#allocation5 + $0x254] sm:$0xf]
    %v283 = vld [vmem:[#allocation5 + $0x258] sm:$0xf]
    %v284 = vld [vmem:[#allocation5 + $0x25c] sm:$0xf]
    %v285 = vld [vmem:[#allocation5 + $0x260] sm:$0xf]
    %v286 = vld [vmem:[#allocation5 + $0x264] sm:$0xf]
    %v287 = vld [vmem:[#allocation5 + $0x268] sm:$0xf]
    %v288 = vld [vmem:[#allocation5 + $0x26c] sm:$0xf]
    %v289 = vld [vmem:[#allocation5 + $0x270] sm:$0xf]
    %v290 = vld [vmem:[#allocation5 + $0x274] sm:$0xf]
    %v291 = vld [vmem:[#allocation5 + $0x278] sm:$0xf]
    %v292 = vld [vmem:[#allocation5 + $0x27c] sm:$0xf]
    %v293 = vld [vmem:[#allocation5 + $0x280] sm:$0xf]
    %v294 = vld [vmem:[#allocation5 + $0x284] sm:$0xf]
    %v295 = vld [vmem:[#allocation5 + $0x288] sm:$0xf]
    %v296 = vld [vmem:[#allocation5 + $0x28c] sm:$0xf]
    %v297 = vld [vmem:[#allocation5 + $0x290] sm:$0xf]
    %v298 = vld [vmem:[#allocation5 + $0x294] sm:$0xf]
    %v299 = vld [vmem:[#allocation5 + $0x298] sm:$0xf]
    %v300 = vld [vmem:[#allocation5 + $0x29c] sm:$0xf]
    %v301 = vld [vmem:[#allocation5 + $0x2a0] sm:$0xf]
    %v302 = vld [vmem:[#allocation5 + $0x2a4] sm:$0xf]
    %v303 = vld [vmem:[#allocation5 + $0x2a8] sm:$0xf]
    %v304 = vld [vmem:[#allocation5 + $0x2ac] sm:$0xf]
    %v305 = vld [vmem:[#allocation5 + $0x2b0] sm:$0xf]
    %v306 = vld [vmem:[#allocation5 + $0x2b4] sm:$0xf]
    %v307 = vld [vmem:[#allocation5 + $0x2b8] sm:$0xf]
    %v308 = vld [vmem:[#allocation5 + $0x2bc] sm:$0xf]
    %v309 = vld [vmem:[#allocation5 + $0x2c0] sm:$0xf]
    %v310 = vld [vmem:[#allocation5 + $0x2c4] sm:$0xf]
    %v311 = vld [vmem:[#allocation5 + $0x2c8] sm:$0xf]
    %v312 = vld [vmem:[#allocation5 + $0x2cc] sm:$0xf]
    %v313 = vld [vmem:[#allocation5 + $0x2d0] sm:$0xf]
    %v314 = vld [vmem:[#allocation5 + $0x2d4] sm:$0xf]
    %v315 = vld [vmem:[#allocation5 + $0x2d8] sm:$0xf]
    %v316 = vld [vmem:[#allocation5 + $0x2dc] sm:$0xf]
    %v317 = vld [vmem:[#allocation5 + $0x2e0] sm:$0xf]
    %v318 = vld [vmem:[#allocation5 + $0x2e4] sm:$0xf]
    %v319 = vld [vmem:[#allocation5 + $0x2e8] sm:$0xf]
    %v320 = vld [vmem:[#allocation5 + $0x2ec] sm:$0xf]
    %v321 = vld [vmem:[#allocation5 + $0x2f0] sm:$0xf]
    %v322 = vld [vmem:[#allocation5 + $0x2f4] sm:$0xf]
    %v323 = vld [vmem:[#allocation5 + $0x2f8] sm:$0xf]
    %v324 = vld [vmem:[#allocation5 + $0x2fc] sm:$0xf]
    %v325 = vld [vmem:[%s2] sm:$0x1]
    %v327 = vlaneseq
    %v328 = vshrl.u32 %v327, 7
    %v329 = vsub.s32 0, %v328
    %v330 = vrot.slane %v325, %v329
    %v524 = vunpack.c.l.b16 %v133
    %v525 = vunpack.c.l.b16 %v134
    %v526 = vunpack.c.l.b16 %v135
    %v527 = vunpack.c.l.b16 %v136
    %v528 = vunpack.c.l.b16 %v137
    %v529 = vunpack.c.l.b16 %v138
    %v530 = vunpack.c.l.b16 %v139
    %v531 = vunpack.c.l.b16 %v140
    %v532 = vunpack.c.l.b16 %v141
    %v533 = vunpack.c.l.b16 %v142
    %v534 = vunpack.c.l.b16 %v143
    %v535 = vunpack.c.l.b16 %v144
    %v536 = vunpack.c.l.b16 %v145
    %v537 = vunpack.c.l.b16 %v146
    %v538 = vunpack.c.l.b16 %v147
    %v539 = vunpack.c.l.b16 %v148
    %v540 = vunpack.c.l.b16 %v149
    %v541 = vunpack.c.l.b16 %v150
    %v542 = vunpack.c.l.b16 %v151
    %v543 = vunpack.c.l.b16 %v152
    %v544 = vunpack.c.l.b16 %v153
    %v545 = vunpack.c.l.b16 %v154
    %v546 = vunpack.c.l.b16 %v155
    %v547 = vunpack.c.l.b16 %v156
    %v548 = vunpack.c.l.b16 %v157
    %v549 = vunpack.c.l.b16 %v158
    %v550 = vunpack.c.l.b16 %v159
    %v551 = vunpack.c.l.b16 %v160
    %v552 = vunpack.c.l.b16 %v161
    %v553 = vunpack.c.l.b16 %v162
    %v554 = vunpack.c.l.b16 %v163
    %v555 = vunpack.c.l.b16 %v164
    %v556 = vunpack.c.l.b16 %v165
    %v557 = vunpack.c.l.b16 %v166
    %v558 = vunpack.c.l.b16 %v167
    %v559 = vunpack.c.l.b16 %v168
    %v560 = vunpack.c.l.b16 %v169
    %v561 = vunpack.c.l.b16 %v170
    %v562 = vunpack.c.l.b16 %v171
    %v563 = vunpack.c.l.b16 %v172
    %v564 = vunpack.c.l.b16 %v173
    %v565 = vunpack.c.l.b16 %v174
    %v566 = vunpack.c.l.b16 %v175
    %v567 = vunpack.c.l.b16 %v176
    %v568 = vunpack.c.l.b16 %v177
    %v569 = vunpack.c.l.b16 %v178
    %v570 = vunpack.c.l.b16 %v179
    %v571 = vunpack.c.l.b16 %v180
    %v572 = vunpack.c.l.b16 %v181
    %v573 = vunpack.c.l.b16 %v182
    %v574 = vunpack.c.l.b16 %v183
    %v575 = vunpack.c.l.b16 %v184
    %v576 = vunpack.c.l.b16 %v185
    %v577 = vunpack.c.l.b16 %v186
    %v578 = vunpack.c.l.b16 %v187
    %v579 = vunpack.c.l.b16 %v188
    %v580 = vunpack.c.l.b16 %v189
    %v581 = vunpack.c.l.b16 %v190
    %v582 = vunpack.c.l.b16 %v191
    %v583 = vunpack.c.l.b16 %v192
    %v584 = vunpack.c.l.b16 %v193
    %v585 = vunpack.c.l.b16 %v194
    %v586 = vunpack.c.l.b16 %v195
    %v587 = vunpack.c.l.b16 %v196
    %v588 = vunpack.c.l.b16 %v197
    %v589 = vunpack.c.l.b16 %v198
    %v590 = vunpack.c.l.b16 %v199
    %v591 = vunpack.c.l.b16 %v200
    %v592 = vunpack.c.l.b16 %v201
    %v593 = vunpack.c.l.b16 %v202
    %v594 = vunpack.c.l.b16 %v203
    %v595 = vunpack.c.l.b16 %v204
    %v596 = vunpack.c.l.b16 %v205
    %v597 = vunpack.c.l.b16 %v206
    %v598 = vunpack.c.l.b16 %v207
    %v599 = vunpack.c.l.b16 %v208
    %v600 = vunpack.c.l.b16 %v209
    %v601 = vunpack.c.l.b16 %v210
    %v602 = vunpack.c.l.b16 %v211
    %v603 = vunpack.c.l.b16 %v212
    %v604 = vunpack.c.l.b16 %v213
    %v605 = vunpack.c.l.b16 %v214
    %v606 = vunpack.c.l.b16 %v215
    %v607 = vunpack.c.l.b16 %v216
    %v608 = vunpack.c.l.b16 %v217
    %v609 = vunpack.c.l.b16 %v218
    %v610 = vunpack.c.l.b16 %v219
    %v611 = vunpack.c.l.b16 %v220
    %v612 = vunpack.c.l.b16 %v221
    %v613 = vunpack.c.l.b16 %v222
    %v614 = vunpack.c.l.b16 %v223
    %v615 = vunpack.c.l.b16 %v224
    %v616 = vunpack.c.l.b16 %v225
    %v617 = vunpack.c.l.b16 %v226
    %v618 = vunpack.c.l.b16 %v227
    %v619 = vunpack.c.l.b16 %v228
    %v620 = vunpack.c.l.b16 %v229
    %v621 = vunpack.c.l.b16 %v230
    %v622 = vunpack.c.l.b16 %v231
    %v623 = vunpack.c.l.b16 %v232
    %v624 = vunpack.c.l.b16 %v233
    %v625 = vunpack.c.l.b16 %v234
    %v626 = vunpack.c.l.b16 %v235
    %v627 = vunpack.c.l.b16 %v236
    %v628 = vunpack.c.l.b16 %v237
    %v629 = vunpack.c.l.b16 %v238
    %v630 = vunpack.c.l.b16 %v239
    %v631 = vunpack.c.l.b16 %v240
    %v632 = vunpack.c.l.b16 %v241
    %v633 = vunpack.c.l.b16 %v242
    %v634 = vunpack.c.l.b16 %v243
    %v635 = vunpack.c.l.b16 %v244
    %v636 = vunpack.c.l.b16 %v245
    %v637 = vunpack.c.l.b16 %v246
    %v638 = vunpack.c.l.b16 %v247
    %v639 = vunpack.c.l.b16 %v248
    %v640 = vunpack.c.l.b16 %v249
    %v641 = vunpack.c.l.b16 %v250
    %v642 = vunpack.c.l.b16 %v251
    %v643 = vunpack.c.l.b16 %v252
    %v644 = vunpack.c.l.b16 %v253
    %v645 = vunpack.c.l.b16 %v254
    %v646 = vunpack.c.l.b16 %v255
    %v647 = vunpack.c.l.b16 %v256
    %v648 = vunpack.c.l.b16 %v257
    %v649 = vunpack.c.l.b16 %v258
    %v650 = vunpack.c.l.b16 %v259
    %v651 = vunpack.c.l.b16 %v260
    %v652 = vunpack.c.l.b16 %v261
    %v653 = vunpack.c.l.b16 %v262
    %v654 = vunpack.c.l.b16 %v263
    %v655 = vunpack.c.l.b16 %v264
    %v656 = vunpack.c.l.b16 %v265
    %v657 = vunpack.c.l.b16 %v266
    %v658 = vunpack.c.l.b16 %v267
    %v659 = vunpack.c.l.b16 %v268
    %v660 = vunpack.c.l.b16 %v269
    %v661 = vunpack.c.l.b16 %v270
    %v662 = vunpack.c.l.b16 %v271
    %v663 = vunpack.c.l.b16 %v272
    %v664 = vunpack.c.l.b16 %v273
    %v665 = vunpack.c.l.b16 %v274
    %v666 = vunpack.c.l.b16 %v275
    %v667 = vunpack.c.l.b16 %v276
    %v668 = vunpack.c.l.b16 %v277
    %v669 = vunpack.c.l.b16 %v278
    %v670 = vunpack.c.l.b16 %v279
    %v671 = vunpack.c.l.b16 %v280
    %v672 = vunpack.c.l.b16 %v281
    %v673 = vunpack.c.l.b16 %v282
    %v674 = vunpack.c.l.b16 %v283
    %v675 = vunpack.c.l.b16 %v284
    %v676 = vunpack.c.l.b16 %v285
    %v677 = vunpack.c.l.b16 %v286
    %v678 = vunpack.c.l.b16 %v287
    %v679 = vunpack.c.l.b16 %v288
    %v680 = vunpack.c.l.b16 %v289
    %v681 = vunpack.c.l.b16 %v290
    %v682 = vunpack.c.l.b16 %v291
    %v683 = vunpack.c.l.b16 %v292
    %v684 = vunpack.c.l.b16 %v293
    %v685 = vunpack.c.l.b16 %v294
    %v686 = vunpack.c.l.b16 %v295
    %v687 = vunpack.c.l.b16 %v296
    %v688 = vunpack.c.l.b16 %v297
    %v689 = vunpack.c.l.b16 %v298
    %v690 = vunpack.c.l.b16 %v299
    %v691 = vunpack.c.l.b16 %v300
    %v692 = vunpack.c.l.b16 %v301
    %v693 = vunpack.c.l.b16 %v302
    %v694 = vunpack.c.l.b16 %v303
    %v695 = vunpack.c.l.b16 %v304
    %v696 = vunpack.c.l.b16 %v305
    %v697 = vunpack.c.l.b16 %v306
    %v698 = vunpack.c.l.b16 %v307
    %v699 = vunpack.c.l.b16 %v308
    %v700 = vunpack.c.l.b16 %v309
    %v701 = vunpack.c.l.b16 %v310
    %v702 = vunpack.c.l.b16 %v311
    %v703 = vunpack.c.l.b16 %v312
    %v704 = vunpack.c.l.b16 %v313
    %v705 = vunpack.c.l.b16 %v314
    %v706 = vunpack.c.l.b16 %v315
    %v707 = vunpack.c.l.b16 %v316
    %v708 = vunpack.c.l.b16 %v317
    %v709 = vunpack.c.l.b16 %v318
    %v710 = vunpack.c.l.b16 %v319
    %v711 = vunpack.c.l.b16 %v320
    %v712 = vunpack.c.l.b16 %v321
    %v713 = vunpack.c.l.b16 %v322
    %v714 = vunpack.c.l.b16 %v323
    %v715 = vunpack.c.l.b16 %v324
    %v716 = vpack.c.b16 %v525, %v524
    %v717 = vpack.c.b16 %v527, %v526
    %v718 = vpack.c.b16 %v529, %v528
    %v719 = vpack.c.b16 %v531, %v530
    %v720 = vpack.c.b16 %v533, %v532
    %v721 = vpack.c.b16 %v535, %v534
    %v722 = vpack.c.b16 %v537, %v536
    %v723 = vpack.c.b16 %v539, %v538
    %v724 = vpack.c.b16 %v541, %v540
    %v725 = vpack.c.b16 %v543, %v542
    %v726 = vpack.c.b16 %v545, %v544
    %v727 = vpack.c.b16 %v547, %v546
    %v728 = vpack.c.b16 %v549, %v548
    %v729 = vpack.c.b16 %v551, %v550
    %v730 = vpack.c.b16 %v553, %v552
    %v731 = vpack.c.b16 %v555, %v554
    %v732 = vpack.c.b16 %v557, %v556
    %v733 = vpack.c.b16 %v559, %v558
    %v734 = vpack.c.b16 %v561, %v560
    %v735 = vpack.c.b16 %v563, %v562
    %v736 = vpack.c.b16 %v565, %v564
    %v737 = vpack.c.b16 %v567, %v566
    %v738 = vpack.c.b16 %v569, %v568
    %v739 = vpack.c.b16 %v571, %v570
    %v740 = vpack.c.b16 %v573, %v572
    %v741 = vpack.c.b16 %v575, %v574
    %v742 = vpack.c.b16 %v577, %v576
    %v743 = vpack.c.b16 %v579, %v578
    %v744 = vpack.c.b16 %v581, %v580
    %v745 = vpack.c.b16 %v583, %v582
    %v746 = vpack.c.b16 %v585, %v584
    %v747 = vpack.c.b16 %v587, %v586
    %v748 = vpack.c.b16 %v589, %v588
    %v749 = vpack.c.b16 %v591, %v590
    %v750 = vpack.c.b16 %v593, %v592
    %v751 = vpack.c.b16 %v595, %v594
    %v752 = vpack.c.b16 %v597, %v596
    %v753 = vpack.c.b16 %v599, %v598
    %v754 = vpack.c.b16 %v601, %v600
    %v755 = vpack.c.b16 %v603, %v602
    %v756 = vpack.c.b16 %v605, %v604
    %v757 = vpack.c.b16 %v607, %v606
    %v758 = vpack.c.b16 %v609, %v608
    %v759 = vpack.c.b16 %v611, %v610
    %v760 = vpack.c.b16 %v613, %v612
    %v761 = vpack.c.b16 %v615, %v614
    %v762 = vpack.c.b16 %v617, %v616
    %v763 = vpack.c.b16 %v619, %v618
    %v764 = vpack.c.b16 %v621, %v620
    %v765 = vpack.c.b16 %v623, %v622
    %v766 = vpack.c.b16 %v625, %v624
    %v767 = vpack.c.b16 %v627, %v626
    %v768 = vpack.c.b16 %v629, %v628
    %v769 = vpack.c.b16 %v631, %v630
    %v770 = vpack.c.b16 %v633, %v632
    %v771 = vpack.c.b16 %v635, %v634
    %v772 = vpack.c.b16 %v637, %v636
    %v773 = vpack.c.b16 %v639, %v638
    %v774 = vpack.c.b16 %v641, %v640
    %v775 = vpack.c.b16 %v643, %v642
    %v776 = vpack.c.b16 %v645, %v644
    %v777 = vpack.c.b16 %v647, %v646
    %v778 = vpack.c.b16 %v649, %v648
    %v779 = vpack.c.b16 %v651, %v650
    %v780 = vpack.c.b16 %v653, %v652
    %v781 = vpack.c.b16 %v655, %v654
    %v782 = vpack.c.b16 %v657, %v656
    %v783 = vpack.c.b16 %v659, %v658
    %v784 = vpack.c.b16 %v661, %v660
    %v785 = vpack.c.b16 %v663, %v662
    %v786 = vpack.c.b16 %v665, %v664
    %v787 = vpack.c.b16 %v667, %v666
    %v788 = vpack.c.b16 %v669, %v668
    %v789 = vpack.c.b16 %v671, %v670
    %v790 = vpack.c.b16 %v673, %v672
    %v791 = vpack.c.b16 %v675, %v674
    %v792 = vpack.c.b16 %v677, %v676
    %v793 = vpack.c.b16 %v679, %v678
    %v794 = vpack.c.b16 %v681, %v680
    %v795 = vpack.c.b16 %v683, %v682
    %v796 = vpack.c.b16 %v685, %v684
    %v797 = vpack.c.b16 %v687, %v686
    %v798 = vpack.c.b16 %v689, %v688
    %v799 = vpack.c.b16 %v691, %v690
    %v800 = vpack.c.b16 %v693, %v692
    %v801 = vpack.c.b16 %v695, %v694
    %v802 = vpack.c.b16 %v697, %v696
    %v803 = vpack.c.b16 %v699, %v698
    %v804 = vpack.c.b16 %v701, %v700
    %v805 = vpack.c.b16 %v703, %v702
    %v806 = vpack.c.b16 %v705, %v704
    %v807 = vpack.c.b16 %v707, %v706
    %v808 = vpack.c.b16 %v709, %v708
    %v809 = vpack.c.b16 %v711, %v710
    %v810 = vpack.c.b16 %v713, %v712
    %v811 = vpack.c.b16 %v715, %v714
    %908 = vmatprep.subr.bf16.mxu0 0
    %909 = vmatpush1.bf16.msra.mxu0 %v716
    %910 = vmatprep.subr.bf16.mxu0 0
    %911 = vmatpush1.bf16.msra.mxu0 %v717
    %912 = vmatprep.subr.bf16.mxu0 0
    %913 = vmatpush1.bf16.msra.mxu0 %v718
    %914 = vmatprep.subr.bf16.mxu0 0
    %915 = vmatpush1.bf16.msra.mxu0 %v719
    %916 = vmatprep.subr.bf16.mxu0 0
    %917 = vmatpush1.bf16.msra.mxu0 %v720
    %918 = vmatprep.subr.bf16.mxu0 0
    %919 = vmatpush1.bf16.msra.mxu0 %v721
    %920 = vmatprep.subr.bf16.mxu0 0
    %921 = vmatpush1.bf16.msra.mxu0 %v722
    %922 = vmatprep.subr.bf16.mxu0 0
    %923 = vmatpush1.bf16.msra.mxu0 %v723
    %924 = vmatprep.subr.bf16.mxu0 0
    %925 = vmatpush1.bf16.msra.mxu0 %v724
    %926 = vmatprep.subr.bf16.mxu0 0
    %927 = vmatpush1.bf16.msra.mxu0 %v725
    %928 = vmatprep.subr.bf16.mxu0 0
    %929 = vmatpush1.bf16.msra.mxu0 %v726
    %930 = vmatprep.subr.bf16.mxu0 0
    %931 = vmatpush1.bf16.msra.mxu0 %v727
    %932 = vmatprep.subr.bf16.mxu0 0
    %933 = vmatpush1.bf16.msra.mxu0 %v728
    %934 = vmatprep.subr.bf16.mxu0 0
    %935 = vmatpush1.bf16.msra.mxu0 %v729
    %936 = vmatprep.subr.bf16.mxu0 0
    %937 = vmatpush1.bf16.msra.mxu0 %v730
    %938 = vmatprep.subr.bf16.mxu0 0
    %939 = vmatpush1.bf16.msra.mxu0 %v731
    %940 = vmatprep.mubr.bf16.mxu0 %v122
    %941 = vmatmul.mubr.bf16.gmra.mrb[0].mxu0 %v121
    %v942 = vpop.f32.mrb[0].mxu0
    %v943 = vadd.f32 %v330, %v942
    %v944 = vpop.f32.mrb[0].mxu0
    %v945 = vpop.f32.mrb[0].mxu0
    %v946 = vpop.f32.mrb[0].mxu0
    %947 = vdwg.mxu0
    %948 = vmatprep.subr.bf16.mxu0 0
    %949 = vmatpush1.bf16.msra.mxu0 %v732
    %950 = vmatprep.subr.bf16.mxu0 0
    %951 = vmatpush1.bf16.msra.mxu0 %v733
    %952 = vmatprep.subr.bf16.mxu0 0
    %953 = vmatpush1.bf16.msra.mxu0 %v734
    %954 = vmatprep.subr.bf16.mxu0 0
    %955 = vmatpush1.bf16.msra.mxu0 %v735
    %956 = vmatprep.subr.bf16.mxu0 0
    %957 = vmatpush1.bf16.msra.mxu0 %v736
    %958 = vmatprep.subr.bf16.mxu0 0
    %959 = vmatpush1.bf16.msra.mxu0 %v737
    %960 = vmatprep.subr.bf16.mxu0 0
    %961 = vmatpush1.bf16.msra.mxu0 %v738
    %962 = vmatprep.subr.bf16.mxu0 0
    %963 = vmatpush1.bf16.msra.mxu0 %v739
    %964 = vmatprep.subr.bf16.mxu0 0
    %965 = vmatpush1.bf16.msra.mxu0 %v740
    %966 = vmatprep.subr.bf16.mxu0 0
    %967 = vmatpush1.bf16.msra.mxu0 %v741
    %968 = vmatprep.subr.bf16.mxu0 0
    %969 = vmatpush1.bf16.msra.mxu0 %v742
    %970 = vmatprep.subr.bf16.mxu0 0
    %971 = vmatpush1.bf16.msra.mxu0 %v743
    %972 = vmatprep.subr.bf16.mxu0 0
    %973 = vmatpush1.bf16.msra.mxu0 %v744
    %974 = vmatprep.subr.bf16.mxu0 0
    %975 = vmatpush1.bf16.msra.mxu0 %v745
    %976 = vmatprep.subr.bf16.mxu0 0
    %977 = vmatpush1.bf16.msra.mxu0 %v746
    %978 = vmatprep.subr.bf16.mxu0 0
    %979 = vmatpush1.bf16.msra.mxu0 %v747
    %980 = vmatprep.mubr.bf16.mxu0 %v124
    %981 = vmatmul.mubr.bf16.gmra.mrb[0].mxu0 %v123
    %v982 = vpop.f32.mrb[0].mxu0
    %v983 = vadd.f32 %v943, %v982
    %v984 = vpop.f32.mrb[0].mxu0
    %v985 = vpop.f32.mrb[0].mxu0
    %v986 = vpop.f32.mrb[0].mxu0
    %987 = vdwg.mxu0
    %988 = vmatprep.subr.bf16.mxu0 0
    %989 = vmatpush1.bf16.msra.mxu0 %v748
    %990 = vmatprep.subr.bf16.mxu0 0
    %991 = vmatpush1.bf16.msra.mxu0 %v749
    %992 = vmatprep.subr.bf16.mxu0 0
    %993 = vmatpush1.bf16.msra.mxu0 %v750
    %994 = vmatprep.subr.bf16.mxu0 0
    %995 = vmatpush1.bf16.msra.mxu0 %v751
    %996 = vmatprep.subr.bf16.mxu0 0
    %997 = vmatpush1.bf16.msra.mxu0 %v752
    %998 = vmatprep.subr.bf16.mxu0 0
    %999 = vmatpush1.bf16.msra.mxu0 %v753
    %1000 = vmatprep.subr.bf16.mxu0 0
    %1001 = vmatpush1.bf16.msra.mxu0 %v754
    %1002 = vmatprep.subr.bf16.mxu0 0
    %1003 = vmatpush1.bf16.msra.mxu0 %v755
    %1004 = vmatprep.subr.bf16.mxu0 0
    %1005 = vmatpush1.bf16.msra.mxu0 %v756
    %1006 = vmatprep.subr.bf16.mxu0 0
    %1007 = vmatpush1.bf16.msra.mxu0 %v757
    %1008 = vmatprep.subr.bf16.mxu0 0
    %1009 = vmatpush1.bf16.msra.mxu0 %v758
    %1010 = vmatprep.subr.bf16.mxu0 0
    %1011 = vmatpush1.bf16.msra.mxu0 %v759
    %1012 = vmatprep.subr.bf16.mxu0 0
    %1013 = vmatpush1.bf16.msra.mxu0 %v760
    %1014 = vmatprep.subr.bf16.mxu0 0
    %1015 = vmatpush1.bf16.msra.mxu0 %v761
    %1016 = vmatprep.subr.bf16.mxu0 0
    %1017 = vmatpush1.bf16.msra.mxu0 %v762
    %1018 = vmatprep.subr.bf16.mxu0 0
    %1019 = vmatpush1.bf16.msra.mxu0 %v763
    %1020 = vmatprep.mubr.bf16.mxu0 %v126
    %1021 = vmatmul.mubr.bf16.gmra.mrb[0].mxu0 %v125
    %v1022 = vpop.f32.mrb[0].mxu0
    %v1023 = vadd.f32 %v983, %v1022
    %v1024 = vpop.f32.mrb[0].mxu0
    %v1025 = vpop.f32.mrb[0].mxu0
    %v1026 = vpop.f32.mrb[0].mxu0
    %1027 = vdwg.mxu0
    %1028 = vmatprep.subr.bf16.mxu0 0
    %1029 = vmatpush1.bf16.msra.mxu0 %v764
    %1030 = vmatprep.subr.bf16.mxu0 0
    %1031 = vmatpush1.bf16.msra.mxu0 %v765
    %1032 = vmatprep.subr.bf16.mxu0 0
    %1033 = vmatpush1.bf16.msra.mxu0 %v766
    %1034 = vmatprep.subr.bf16.mxu0 0
    %1035 = vmatpush1.bf16.msra.mxu0 %v767
    %1036 = vmatprep.subr.bf16.mxu0 0
    %1037 = vmatpush1.bf16.msra.mxu0 %v768
    %1038 = vmatprep.subr.bf16.mxu0 0
    %1039 = vmatpush1.bf16.msra.mxu0 %v769
    %1040 = vmatprep.subr.bf16.mxu0 0
    %1041 = vmatpush1.bf16.msra.mxu0 %v770
    %1042 = vmatprep.subr.bf16.mxu0 0
    %1043 = vmatpush1.bf16.msra.mxu0 %v771
    %1044 = vmatprep.subr.bf16.mxu0 0
    %1045 = vmatpush1.bf16.msra.mxu0 %v772
    %1046 = vmatprep.subr.bf16.mxu0 0
    %1047 = vmatpush1.bf16.msra.mxu0 %v773
    %1048 = vmatprep.subr.bf16.mxu0 0
    %1049 = vmatpush1.bf16.msra.mxu0 %v774
    %1050 = vmatprep.subr.bf16.mxu0 0
    %1051 = vmatpush1.bf16.msra.mxu0 %v775
    %1052 = vmatprep.subr.bf16.mxu0 0
    %1053 = vmatpush1.bf16.msra.mxu0 %v776
    %1054 = vmatprep.subr.bf16.mxu0 0
    %1055 = vmatpush1.bf16.msra.mxu0 %v777
    %1056 = vmatprep.subr.bf16.mxu0 0
    %1057 = vmatpush1.bf16.msra.mxu0 %v778
    %1058 = vmatprep.subr.bf16.mxu0 0
    %1059 = vmatpush1.bf16.msra.mxu0 %v779
    %1060 = vmatprep.mubr.bf16.mxu0 %v128
    %1061 = vmatmul.mubr.bf16.gmra.mrb[0].mxu0 %v127
    %v1062 = vpop.f32.mrb[0].mxu0
    %v1063 = vadd.f32 %v1023, %v1062
    %v1064 = vpop.f32.mrb[0].mxu0
    %v1065 = vpop.f32.mrb[0].mxu0
    %v1066 = vpop.f32.mrb[0].mxu0
    %1067 = vdwg.mxu0
    %1068 = vmatprep.subr.bf16.mxu0 0
    %1069 = vmatpush1.bf16.msra.mxu0 %v780
    %1070 = vmatprep.subr.bf16.mxu0 0
    %1071 = vmatpush1.bf16.msra.mxu0 %v781
    %1072 = vmatprep.subr.bf16.mxu0 0
    %1073 = vmatpush1.bf16.msra.mxu0 %v782
    %1074 = vmatprep.subr.bf16.mxu0 0
    %1075 = vmatpush1.bf16.msra.mxu0 %v783
    %1076 = vmatprep.subr.bf16.mxu0 0
    %1077 = vmatpush1.bf16.msra.mxu0 %v784
    %1078 = vmatprep.subr.bf16.mxu0 0
    %1079 = vmatpush1.bf16.msra.mxu0 %v785
    %1080 = vmatprep.subr.bf16.mxu0 0
    %1081 = vmatpush1.bf16.msra.mxu0 %v786
    %1082 = vmatprep.subr.bf16.mxu0 0
    %1083 = vmatpush1.bf16.msra.mxu0 %v787
    %1084 = vmatprep.subr.bf16.mxu0 0
    %1085 = vmatpush1.bf16.msra.mxu0 %v788
    %1086 = vmatprep.subr.bf16.mxu0 0
    %1087 = vmatpush1.bf16.msra.mxu0 %v789
    %1088 = vmatprep.subr.bf16.mxu0 0
    %1089 = vmatpush1.bf16.msra.mxu0 %v790
    %1090 = vmatprep.subr.bf16.mxu0 0
    %1091 = vmatpush1.bf16.msra.mxu0 %v791
    %1092 = vmatprep.subr.bf16.mxu0 0
    %1093 = vmatpush1.bf16.msra.mxu0 %v792
    %1094 = vmatprep.subr.bf16.mxu0 0
    %1095 = vmatpush1.bf16.msra.mxu0 %v793
    %1096 = vmatprep.subr.bf16.mxu0 0
    %1097 = vmatpush1.bf16.msra.mxu0 %v794
    %1098 = vmatprep.subr.bf16.mxu0 0
    %1099 = vmatpush1.bf16.msra.mxu0 %v795
    %1100 = vmatprep.mubr.bf16.mxu0 %v130
    %1101 = vmatmul.mubr.bf16.gmra.mrb[0].mxu0 %v129
    %v1102 = vpop.f32.mrb[0].mxu0
    %v1103 = vadd.f32 %v1063, %v1102
    %v1104 = vpop.f32.mrb[0].mxu0
    %v1105 = vpop.f32.mrb[0].mxu0
    %v1106 = vpop.f32.mrb[0].mxu0
    %1107 = vdwg.mxu0
    %1108 = vmatprep.subr.bf16.mxu0 0
    %1109 = vmatpush1.bf16.msra.mxu0 %v796
    %1110 = vmatprep.subr.bf16.mxu0 0
    %1111 = vmatpush1.bf16.msra.mxu0 %v797
    %1112 = vmatprep.subr.bf16.mxu0 0
    %1113 = vmatpush1.bf16.msra.mxu0 %v798
    %1114 = vmatprep.subr.bf16.mxu0 0
    %1115 = vmatpush1.bf16.msra.mxu0 %v799
    %1116 = vmatprep.subr.bf16.mxu0 0
    %1117 = vmatpush1.bf16.msra.mxu0 %v800
    %1118 = vmatprep.subr.bf16.mxu0 0
    %1119 = vmatpush1.bf16.msra.mxu0 %v801
    %1120 = vmatprep.subr.bf16.mxu0 0
    %1121 = vmatpush1.bf16.msra.mxu0 %v802
    %1122 = vmatprep.subr.bf16.mxu0 0
    %1123 = vmatpush1.bf16.msra.mxu0 %v803
    %1124 = vmatprep.subr.bf16.mxu0 0
    %1125 = vmatpush1.bf16.msra.mxu0 %v804
    %1126 = vmatprep.subr.bf16.mxu0 0
    %1127 = vmatpush1.bf16.msra.mxu0 %v805
    %1128 = vmatprep.subr.bf16.mxu0 0
    %1129 = vmatpush1.bf16.msra.mxu0 %v806
    %1130 = vmatprep.subr.bf16.mxu0 0
    %1131 = vmatpush1.bf16.msra.mxu0 %v807
    %1132 = vmatprep.subr.bf16.mxu0 0
    %1133 = vmatpush1.bf16.msra.mxu0 %v808
    %1134 = vmatprep.subr.bf16.mxu0 0
    %1135 = vmatpush1.bf16.msra.mxu0 %v809
    %1136 = vmatprep.subr.bf16.mxu0 0
    %1137 = vmatpush1.bf16.msra.mxu0 %v810
    %1138 = vmatprep.subr.bf16.mxu0 0
    %1139 = vmatpush1.bf16.msra.mxu0 %v811
    %1140 = vmatprep.mubr.bf16.mxu0 %v132
    %1141 = vmatmul.mubr.bf16.gmra.mrb[0].mxu0 %v131
    %v1142 = vpop.f32.mrb[0].mxu0
    %v1143 = vadd.f32 %v1103, %v1142
    %v1144 = vpop.f32.mrb[0].mxu0
    %v1145 = vpop.f32.mrb[0].mxu0
    %v1146 = vpop.f32.mrb[0].mxu0
    %1147 = vdwg.mxu0
    %1148 = vst [vmem:[#allocation7] sm:$0xff] %v1143
    // Predicated region
    $region22: #{tpu_custom_call.1} parent=1 // pred_check
      _
    $region23: #{tpu_custom_call.1} parent=1 // pred_check_branch
      %1150 = sbr.rel (0) target = $region25
    $region24: #{tpu_custom_call.1} parent=1 // pred_region
      %s1152 = ssub.s32 128, 128
      %1153 = vsyncadd [#allocation4], %s1152
      %s1155 = sshll.u32 [#allocation7], 4
      %s1156 = int_to_ptr.vmem [resolvable:$true] %s1155
      %1158 = dma.vmem_to_hbm [thread:$0]  %s1156, 128, %s3, [#allocation4]
    $region25: #{tpu_custom_call.1} parent=1 // pred_fallthru
      _
    // Predicated region
    $region26: #{tpu_custom_call.1} parent=1 // pred_check
      _
    $region27: #{tpu_custom_call.1} parent=1 // pred_check_branch
      %1160 = sbr.rel (0) target = $region29
    $region28: #{tpu_custom_call.1} parent=1 // pred_region
      %1161 = dma.done [#allocation4], 128
    $region29: #{tpu_custom_call.1} parent=1 // pred_fallthru
      _
    %1162 = vsyncpa [#allocation3], 1
    %1163 = vsyncpa [#allocation6], 1
    %1164 = vsyncpa [#allocation4], 1

</llo_original>
